<compile_context>
chip_gen: v7x
topology: tpu7x:2x2x1
jax: 0.10.0
libtpu: 0.0.40
codegen_flags: <defaults>
</compile_context>

<pallas_src>
import numpy as np
import jax
import jax.numpy as jnp
from jax import lax
from jax.experimental import pallas as pl
from jax.experimental.pallas import tpu as pltpu

EPS = 1e-5
_TAPS = tuple((dy, dx) for dy in (-1, 0, 1) for dx in (-1, 0, 1))   # t = (dy+1)*3 + (dx+1)


# ---------------------------- wrapper-side constants ---------------------------- #

def _tap_masks(H, W):
    """(9, 1, HW) f32 validity masks: mask[t, 0, n] = 1 iff output pixel n's
    tap t reads an in-bounds input pixel (0 elsewhere == zero padding)."""
    HW = H * W
    n = np.arange(HW)
    y, x = n // W, n % W
    m = np.zeros((9, 1, HW), np.float32)
    for t, (dy, dx) in enumerate(_TAPS):
        valid = (y + dy >= 0) & (y + dy < H) & (x + dx >= 0) & (x + dx < W)
        m[t, 0, valid] = 1.0
    return jnp.asarray(m)


def _fused_tap_weight(w_oihw, B):
    """OIHW 3x3 conv weight -> (B*Cout, 9*B*Cin) fused weight, block-diagonal
    over batch; K-axis order = (tap, batch, cin) to match the stacked slab."""
    Cout, Cin = w_oihw.shape[0], w_oihw.shape[1]
    taps = jnp.transpose(w_oihw, (2, 3, 0, 1)).reshape(9, Cout, Cin)        # (9,Cout,Cin)
    eye = jnp.eye(B, dtype=w_oihw.dtype)
    blk = jnp.einsum("tij,ab->taibj", taps, eye).reshape(9, B * Cout, B * Cin)
    return jnp.transpose(blk, (1, 0, 2)).reshape(B * Cout, 9 * B * Cin)


# ---------------------------- Pallas kernel + wrapper ---------------------------- #

def residual_block(x_nchw, params):
    """Pallas implementation of ResidualBlock.forward. x_nchw: (B, Cin, H, W)."""
    w1, g1, b1, w2, g2, b2 = params                      # conv weights in PyTorch OIHW
    B, Cin, H, W = x_nchw.shape
    Cout = w1.shape[0]
    HW = H * W
    R = B * Cout
    assert Cin == Cout, "residual add requires dim_in == dim_out"

    x2 = x_nchw.reshape(B * Cin, HW).astype(jnp.float32)        # channel-major, no transpose
    w1f = _fused_tap_weight(w1.astype(jnp.float32), B)          # (R, 9R)
    w2f = _fused_tap_weight(w2.astype(jnp.float32), B)          # (R, 9R)
    masks = _tap_masks(H, W)                                    # (9, 1, HW)
    gb = jnp.stack([jnp.tile(g1, B), jnp.tile(b1, B),
                    jnp.tile(g2, B), jnp.tile(b2, B)], axis=1).astype(jnp.float32)   # (R, 4)

    def conv3x3(h, w, mask_ref):
        """3x3 / stride-1 / pad-1 conv on a (R, HW) slab via roll+mask and ONE matmul."""
        parts = []
        for t, (dy, dx) in enumerate(_TAPS):
            d = dy * W + dx
            if d == 0:
                parts.append(h)                                       # center tap: no shift/mask
            else:
                shifted = pltpu.roll(h, shift=(-d) % HW, axis=1)      # XLU lane rotation
                parts.append(shifted * mask_ref[t])                   # zero-pad via mask (VPU)
        slab = jnp.concatenate(parts, axis=0)                         # (9R, HW) stays in VMEM
        return jnp.dot(w, slab, preferred_element_type=jnp.float32)   # (R, HW), single MXU push

    def inorm(h, gamma, beta):
        """Per-row (= per-instance, per-channel) mean / biased variance over HW lanes."""
        mean = jnp.mean(h, axis=-1, keepdims=True)
        var = jnp.mean(jnp.square(h - mean), axis=-1, keepdims=True)
        return (h - mean) * lax.rsqrt(var + EPS) * gamma + beta

    def kernel(x_ref, w1_ref, w2_ref, mask_ref, gb_ref, o_ref):
        x = x_ref[...]                                                 # (R, HW)
        h = conv3x3(x, w1_ref[...], mask_ref)                          # conv1
        h = jnp.maximum(inorm(h, gb_ref[:, 0:1], gb_ref[:, 1:2]), 0.0) # IN1 + ReLU
        h = conv3x3(h, w2_ref[...], mask_ref)                          # conv2 (h stays in VMEM)
        h = inorm(h, gb_ref[:, 2:3], gb_ref[:, 3:4])                   # IN2
        o_ref[...] = x + h                                             # residual add

    out = pl.pallas_call(
        kernel,
        out_shape=jax.ShapeDtypeStruct((R, HW), jnp.float32),
        grid_spec=pltpu.PrefetchScalarGridSpec(
            num_scalar_prefetch=0,
            grid=(1,),                                               # batch folded into sublanes
            in_specs=[
                pl.BlockSpec((R, HW), lambda i: (0, 0)),             # x slab (B*C, HW)
                pl.BlockSpec((R, 9 * R), lambda i: (0, 0)),          # fused conv1 weight
                pl.BlockSpec((R, 9 * R), lambda i: (0, 0)),          # fused conv2 weight
                pl.BlockSpec((9, 1, HW), lambda i: (0, 0, 0)),       # boundary masks (~9 KiB)
                pl.BlockSpec((R, 4), lambda i: (0, 0)),              # packed gamma/beta
            ],
            out_specs=pl.BlockSpec((R, HW), lambda i: (0, 0)),
        ),
        compiler_params=pltpu.CompilerParams(
            dimension_semantics=("arbitrary",)),
    )(x2, w1f, w2f, masks, gb)

    return out.reshape(B, Cout, H, W)      # pure reshape: channel-major already == NCHW


# ---------------------------- pure-JAX reference ---------------------------- #

def reference(x_nchw, params):
    w1, g1, b1, w2, g2, b2 = params

    def conv(x, w):
        return lax.conv_general_dilated(
            x, w, window_strides=(1, 1), padding=((1, 1), (1, 1)),
            dimension_numbers=("NCHW", "OIHW", "NCHW"))

    def inorm(x, g, b):
        mean = jnp.mean(x, axis=(2, 3), keepdims=True)
        var = jnp.mean(jnp.square(x - mean), axis=(2, 3), keepdims=True)
        return (x - mean) * lax.rsqrt(var + EPS) * g.reshape(1, -1, 1, 1) \
            + b.reshape(1, -1, 1, 1)

    h = jnp.maximum(inorm(conv(x_nchw, w1), g1, b1), 0.0)
    h = inorm(conv(h, w2), g2, b2)
    return x_nchw + h


# ---------------------------- main ---------------------------- #

if __name__ == "__main__":
    B, C, H, W = 2, 4, 16, 16          # dim_in = dim_out = 4
    key = jax.random.PRNGKey(0)
    kx, kw1, kw2, kg1, kb1, kg2, kb2 = jax.random.split(key, 7)

    x = jax.random.normal(kx, (B, C, H, W), dtype=jnp.float32)

    # Deterministic parameter init (conv weights OIHW, no bias; affine IN params).
    w1 = 0.1 * jax.random.normal(kw1, (C, C, 3, 3), dtype=jnp.float32)
    w2 = 0.1 * jax.random.normal(kw2, (C, C, 3, 3), dtype=jnp.float32)
    g1 = 1.0 + 0.1 * jax.random.normal(kg1, (C,), dtype=jnp.float32)
    b1 = 0.1 * jax.random.normal(kb1, (C,), dtype=jnp.float32)
    g2 = 1.0 + 0.1 * jax.random.normal(kg2, (C,), dtype=jnp.float32)
    b2 = 0.1 * jax.random.normal(kb2, (C,), dtype=jnp.float32)
    params = (w1, g1, b1, w2, g2, b2)

    out = jax.block_until_ready(residual_block(x, params))
    ref = jax.block_until_ready(reference(x, params))

    assert out.shape == (B, C, H, W), out.shape
    assert jnp.allclose(out, ref, atol=1e-4, rtol=1e-4), \
        float(jnp.max(jnp.abs(out - ref)))

    print("KERNEL_OK")
</pallas_src>

<mosaic_0001>
module attributes {stable_mosaic.version = 11 : i64} {
  func.func @kernel(%arg0: i32, %arg1: memref<8x256xf32, #tpu.memory_space<vmem>>, %arg2: memref<8x72xf32, #tpu.memory_space<vmem>>, %arg3: memref<8x72xf32, #tpu.memory_space<vmem>>, %arg4: memref<9x1x256xf32, #tpu.memory_space<vmem>>, %arg5: memref<8x4xf32, #tpu.memory_space<vmem>>, %arg6: memref<8x256xf32, #tpu.memory_space<vmem>>) attributes {dimension_semantics = [#tpu.dimension_semantics<arbitrary>], iteration_bounds = array<i64: 1>, scalar_prefetch = 0 : i64, scratch_operands = 0 : i64, tpu.core_type = #tpu.core_type<tc>, window_params = [{pipeline_mode = #tpu.pipeline_mode<synchronous>, transform_indices = @transform_0, window_bounds = array<i64: 8, 256>}, {pipeline_mode = #tpu.pipeline_mode<synchronous>, transform_indices = @transform_1, window_bounds = array<i64: 8, 72>}, {pipeline_mode = #tpu.pipeline_mode<synchronous>, transform_indices = @transform_2, window_bounds = array<i64: 8, 72>}, {pipeline_mode = #tpu.pipeline_mode<synchronous>, transform_indices = @transform_3, window_bounds = array<i64: 9, 1, 256>}, {pipeline_mode = #tpu.pipeline_mode<synchronous>, transform_indices = @transform_4, window_bounds = array<i64: 8, 4>}, {pipeline_mode = #tpu.pipeline_mode<synchronous>, transform_indices = @transform_5, window_bounds = array<i64: 8, 256>}]} {
    %c0 = arith.constant 0 : index
    %c0_0 = arith.constant 0 : index
    %0 = vector.load %arg1[%c0, %c0_0] : memref<8x256xf32, #tpu.memory_space<vmem>>, vector<8x256xf32>
    %c0_1 = arith.constant 0 : index
    %c0_2 = arith.constant 0 : index
    %1 = vector.load %arg2[%c0_1, %c0_2] : memref<8x72xf32, #tpu.memory_space<vmem>>, vector<8x72xf32>
    %c17_i32 = arith.constant 17 : i32
    %2 = tpu.dynamic_rotate %0 by %c17_i32 dim 1 : vector<8x256xf32>, i32 -> vector<8x256xf32>
    %c0_3 = arith.constant 0 : index
    %c0_4 = arith.constant 0 : index
    %c0_5 = arith.constant 0 : index
    %3 = vector.load %arg4[%c0_3, %c0_4, %c0_5] : memref<9x1x256xf32, #tpu.memory_space<vmem>>, vector<1x1x256xf32>
    %4 = vector.shape_cast %3 : vector<1x1x256xf32> to vector<1x256xf32>
    %5 = vector.broadcast %4 : vector<1x256xf32> to vector<8x256xf32>
    %6 = arith.mulf %2, %5 : vector<8x256xf32>
    %c16_i32 = arith.constant 16 : i32
    %7 = tpu.dynamic_rotate %0 by %c16_i32 dim 1 : vector<8x256xf32>, i32 -> vector<8x256xf32>
    %c1 = arith.constant 1 : index
    %c0_6 = arith.constant 0 : index
    %c0_7 = arith.constant 0 : index
    %8 = vector.load %arg4[%c1, %c0_6, %c0_7] : memref<9x1x256xf32, #tpu.memory_space<vmem>>, vector<1x1x256xf32>
    %9 = vector.shape_cast %8 : vector<1x1x256xf32> to vector<1x256xf32>
    %10 = vector.broadcast %9 : vector<1x256xf32> to vector<8x256xf32>
    %11 = arith.mulf %7, %10 : vector<8x256xf32>
    %c15_i32 = arith.constant 15 : i32
    %12 = tpu.dynamic_rotate %0 by %c15_i32 dim 1 : vector<8x256xf32>, i32 -> vector<8x256xf32>
    %c2 = arith.constant 2 : index
    %c0_8 = arith.constant 0 : index
    %c0_9 = arith.constant 0 : index
    %13 = vector.load %arg4[%c2, %c0_8, %c0_9] : memref<9x1x256xf32, #tpu.memory_space<vmem>>, vector<1x1x256xf32>
    %14 = vector.shape_cast %13 : vector<1x1x256xf32> to vector<1x256xf32>
    %15 = vector.broadcast %14 : vector<1x256xf32> to vector<8x256xf32>
    %16 = arith.mulf %12, %15 : vector<8x256xf32>
    %c1_i32 = arith.constant 1 : i32
    %17 = tpu.dynamic_rotate %0 by %c1_i32 dim 1 : vector<8x256xf32>, i32 -> vector<8x256xf32>
    %c3 = arith.constant 3 : index
    %c0_10 = arith.constant 0 : index
    %c0_11 = arith.constant 0 : index
    %18 = vector.load %arg4[%c3, %c0_10, %c0_11] : memref<9x1x256xf32, #tpu.memory_space<vmem>>, vector<1x1x256xf32>
    %19 = vector.shape_cast %18 : vector<1x1x256xf32> to vector<1x256xf32>
    %20 = vector.broadcast %19 : vector<1x256xf32> to vector<8x256xf32>
    %21 = arith.mulf %17, %20 : vector<8x256xf32>
    %c255_i32 = arith.constant 255 : i32
    %22 = tpu.dynamic_rotate %0 by %c255_i32 dim 1 : vector<8x256xf32>, i32 -> vector<8x256xf32>
    %c5 = arith.constant 5 : index
    %c0_12 = arith.constant 0 : index
    %c0_13 = arith.constant 0 : index
    %23 = vector.load %arg4[%c5, %c0_12, %c0_13] : memref<9x1x256xf32, #tpu.memory_space<vmem>>, vector<1x1x256xf32>
    %24 = vector.shape_cast %23 : vector<1x1x256xf32> to vector<1x256xf32>
    %25 = vector.broadcast %24 : vector<1x256xf32> to vector<8x256xf32>
    %26 = arith.mulf %22, %25 : vector<8x256xf32>
    %c241_i32 = arith.constant 241 : i32
    %27 = tpu.dynamic_rotate %0 by %c241_i32 dim 1 : vector<8x256xf32>, i32 -> vector<8x256xf32>
    %c6 = arith.constant 6 : index
    %c0_14 = arith.constant 0 : index
    %c0_15 = arith.constant 0 : index
    %28 = vector.load %arg4[%c6, %c0_14, %c0_15] : memref<9x1x256xf32, #tpu.memory_space<vmem>>, vector<1x1x256xf32>
    %29 = vector.shape_cast %28 : vector<1x1x256xf32> to vector<1x256xf32>
    %30 = vector.broadcast %29 : vector<1x256xf32> to vector<8x256xf32>
    %31 = arith.mulf %27, %30 : vector<8x256xf32>
    %c240_i32 = arith.constant 240 : i32
    %32 = tpu.dynamic_rotate %0 by %c240_i32 dim 1 : vector<8x256xf32>, i32 -> vector<8x256xf32>
    %c7 = arith.constant 7 : index
    %c0_16 = arith.constant 0 : index
    %c0_17 = arith.constant 0 : index
    %33 = vector.load %arg4[%c7, %c0_16, %c0_17] : memref<9x1x256xf32, #tpu.memory_space<vmem>>, vector<1x1x256xf32>
    %34 = vector.shape_cast %33 : vector<1x1x256xf32> to vector<1x256xf32>
    %35 = vector.broadcast %34 : vector<1x256xf32> to vector<8x256xf32>
    %36 = arith.mulf %32, %35 : vector<8x256xf32>
    %c239_i32 = arith.constant 239 : i32
    %37 = tpu.dynamic_rotate %0 by %c239_i32 dim 1 : vector<8x256xf32>, i32 -> vector<8x256xf32>
    %c8 = arith.constant 8 : index
    %c0_18 = arith.constant 0 : index
    %c0_19 = arith.constant 0 : index
    %38 = vector.load %arg4[%c8, %c0_18, %c0_19] : memref<9x1x256xf32, #tpu.memory_space<vmem>>, vector<1x1x256xf32>
    %39 = vector.shape_cast %38 : vector<1x1x256xf32> to vector<1x256xf32>
    %40 = vector.broadcast %39 : vector<1x256xf32> to vector<8x256xf32>
    %41 = arith.mulf %37, %40 : vector<8x256xf32>
    %42 = tpu.concatenate %6, %11, %16, %21, %0, %26, %31, %36, %41 in 0 : vector<8x256xf32>, vector<8x256xf32>, vector<8x256xf32>, vector<8x256xf32>, vector<8x256xf32>, vector<8x256xf32>, vector<8x256xf32>, vector<8x256xf32>, vector<8x256xf32> -> vector<72x256xf32>
    %cst = arith.constant dense<0.000000e+00> : vector<8x256xf32>
    %43 = tpu.matmul %1, %42, %cst {dimension_numbers = #tpu.dot_dimension_numbers<[1], [0], [0], [1], [0, 0, 1, 1], [], []>} : vector<8x72xf32>, vector<72x256xf32>, vector<8x256xf32> -> vector<8x256xf32>
    %c0_20 = arith.constant 0 : index
    %c0_21 = arith.constant 0 : index
    %44 = vector.load %arg5[%c0_20, %c0_21] : memref<8x4xf32, #tpu.memory_space<vmem>>, vector<8x1xf32>
    %c0_22 = arith.constant 0 : index
    %c1_23 = arith.constant 1 : index
    %45 = vector.load %arg5[%c0_22, %c1_23] : memref<8x4xf32, #tpu.memory_space<vmem>>, vector<8x1xf32>
    %cst_24 = arith.constant dense<0.000000e+00> : vector<8xf32>
    %46 = vector.multi_reduction <add>, %43, %cst_24 [1] : vector<8x256xf32> to vector<8xf32>
    %47 = vector.shape_cast %46 : vector<8xf32> to vector<8x1xf32>
    %cst_25 = arith.constant 2.560000e+02 : f32
    %48 = vector.broadcast %cst_25 : f32 to vector<8x1xf32>
    %49 = arith.divf %47, %48 : vector<8x1xf32>
    %50 = vector.broadcast %49 : vector<8x1xf32> to vector<8x256xf32>
    %51 = arith.subf %43, %50 : vector<8x256xf32>
    %52 = arith.mulf %51, %51 : vector<8x256xf32>
    %cst_26 = arith.constant dense<0.000000e+00> : vector<8xf32>
    %53 = vector.multi_reduction <add>, %52, %cst_26 [1] : vector<8x256xf32> to vector<8xf32>
    %54 = vector.shape_cast %53 : vector<8xf32> to vector<8x1xf32>
    %cst_27 = arith.constant 2.560000e+02 : f32
    %55 = vector.broadcast %cst_27 : f32 to vector<8x1xf32>
    %56 = arith.divf %54, %55 : vector<8x1xf32>
    %57 = vector.broadcast %49 : vector<8x1xf32> to vector<8x256xf32>
    %58 = arith.subf %43, %57 : vector<8x256xf32>
    %cst_28 = arith.constant 9.99999974E-6 : f32
    %59 = vector.broadcast %cst_28 : f32 to vector<8x1xf32>
    %60 = arith.addf %56, %59 : vector<8x1xf32>
    %61 = math.rsqrt %60 : vector<8x1xf32>
    %62 = vector.broadcast %61 : vector<8x1xf32> to vector<8x256xf32>
    %63 = arith.mulf %58, %62 : vector<8x256xf32>
    %64 = vector.broadcast %44 : vector<8x1xf32> to vector<8x256xf32>
    %65 = arith.mulf %63, %64 : vector<8x256xf32>
    %66 = vector.broadcast %45 : vector<8x1xf32> to vector<8x256xf32>
    %67 = arith.addf %65, %66 : vector<8x256xf32>
    %cst_29 = arith.constant 0.000000e+00 : f32
    %68 = vector.broadcast %cst_29 : f32 to vector<8x256xf32>
    %69 = arith.maximumf %67, %68 : vector<8x256xf32>
    %c0_30 = arith.constant 0 : index
    %c0_31 = arith.constant 0 : index
    %70 = vector.load %arg3[%c0_30, %c0_31] : memref<8x72xf32, #tpu.memory_space<vmem>>, vector<8x72xf32>
    %c17_i32_32 = arith.constant 17 : i32
    %71 = tpu.dynamic_rotate %69 by %c17_i32_32 dim 1 : vector<8x256xf32>, i32 -> vector<8x256xf32>
    %c0_33 = arith.constant 0 : index
    %c0_34 = arith.constant 0 : index
    %c0_35 = arith.constant 0 : index
    %72 = vector.load %arg4[%c0_33, %c0_34, %c0_35] : memref<9x1x256xf32, #tpu.memory_space<vmem>>, vector<1x1x256xf32>
    %73 = vector.shape_cast %72 : vector<1x1x256xf32> to vector<1x256xf32>
    %74 = vector.broadcast %73 : vector<1x256xf32> to vector<8x256xf32>
    %75 = arith.mulf %71, %74 : vector<8x256xf32>
    %c16_i32_36 = arith.constant 16 : i32
    %76 = tpu.dynamic_rotate %69 by %c16_i32_36 dim 1 : vector<8x256xf32>, i32 -> vector<8x256xf32>
    %c1_37 = arith.constant 1 : index
    %c0_38 = arith.constant 0 : index
    %c0_39 = arith.constant 0 : index
    %77 = vector.load %arg4[%c1_37, %c0_38, %c0_39] : memref<9x1x256xf32, #tpu.memory_space<vmem>>, vector<1x1x256xf32>
    %78 = vector.shape_cast %77 : vector<1x1x256xf32> to vector<1x256xf32>
    %79 = vector.broadcast %78 : vector<1x256xf32> to vector<8x256xf32>
    %80 = arith.mulf %76, %79 : vector<8x256xf32>
    %c15_i32_40 = arith.constant 15 : i32
    %81 = tpu.dynamic_rotate %69 by %c15_i32_40 dim 1 : vector<8x256xf32>, i32 -> vector<8x256xf32>
    %c2_41 = arith.constant 2 : index
    %c0_42 = arith.constant 0 : index
    %c0_43 = arith.constant 0 : index
    %82 = vector.load %arg4[%c2_41, %c0_42, %c0_43] : memref<9x1x256xf32, #tpu.memory_space<vmem>>, vector<1x1x256xf32>
    %83 = vector.shape_cast %82 : vector<1x1x256xf32> to vector<1x256xf32>
    %84 = vector.broadcast %83 : vector<1x256xf32> to vector<8x256xf32>
    %85 = arith.mulf %81, %84 : vector<8x256xf32>
    %c1_i32_44 = arith.constant 1 : i32
    %86 = tpu.dynamic_rotate %69 by %c1_i32_44 dim 1 : vector<8x256xf32>, i32 -> vector<8x256xf32>
    %c3_45 = arith.constant 3 : index
    %c0_46 = arith.constant 0 : index
    %c0_47 = arith.constant 0 : index
    %87 = vector.load %arg4[%c3_45, %c0_46, %c0_47] : memref<9x1x256xf32, #tpu.memory_space<vmem>>, vector<1x1x256xf32>
    %88 = vector.shape_cast %87 : vector<1x1x256xf32> to vector<1x256xf32>
    %89 = vector.broadcast %88 : vector<1x256xf32> to vector<8x256xf32>
    %90 = arith.mulf %86, %89 : vector<8x256xf32>
    %c255_i32_48 = arith.constant 255 : i32
    %91 = tpu.dynamic_rotate %69 by %c255_i32_48 dim 1 : vector<8x256xf32>, i32 -> vector<8x256xf32>
    %c5_49 = arith.constant 5 : index
    %c0_50 = arith.constant 0 : index
    %c0_51 = arith.constant 0 : index
    %92 = vector.load %arg4[%c5_49, %c0_50, %c0_51] : memref<9x1x256xf32, #tpu.memory_space<vmem>>, vector<1x1x256xf32>
    %93 = vector.shape_cast %92 : vector<1x1x256xf32> to vector<1x256xf32>
    %94 = vector.broadcast %93 : vector<1x256xf32> to vector<8x256xf32>
    %95 = arith.mulf %91, %94 : vector<8x256xf32>
    %c241_i32_52 = arith.constant 241 : i32
    %96 = tpu.dynamic_rotate %69 by %c241_i32_52 dim 1 : vector<8x256xf32>, i32 -> vector<8x256xf32>
    %c6_53 = arith.constant 6 : index
    %c0_54 = arith.constant 0 : index
    %c0_55 = arith.constant 0 : index
    %97 = vector.load %arg4[%c6_53, %c0_54, %c0_55] : memref<9x1x256xf32, #tpu.memory_space<vmem>>, vector<1x1x256xf32>
    %98 = vector.shape_cast %97 : vector<1x1x256xf32> to vector<1x256xf32>
    %99 = vector.broadcast %98 : vector<1x256xf32> to vector<8x256xf32>
    %100 = arith.mulf %96, %99 : vector<8x256xf32>
    %c240_i32_56 = arith.constant 240 : i32
    %101 = tpu.dynamic_rotate %69 by %c240_i32_56 dim 1 : vector<8x256xf32>, i32 -> vector<8x256xf32>
    %c7_57 = arith.constant 7 : index
    %c0_58 = arith.constant 0 : index
    %c0_59 = arith.constant 0 : index
    %102 = vector.load %arg4[%c7_57, %c0_58, %c0_59] : memref<9x1x256xf32, #tpu.memory_space<vmem>>, vector<1x1x256xf32>
    %103 = vector.shape_cast %102 : vector<1x1x256xf32> to vector<1x256xf32>
    %104 = vector.broadcast %103 : vector<1x256xf32> to vector<8x256xf32>
    %105 = arith.mulf %101, %104 : vector<8x256xf32>
    %c239_i32_60 = arith.constant 239 : i32
    %106 = tpu.dynamic_rotate %69 by %c239_i32_60 dim 1 : vector<8x256xf32>, i32 -> vector<8x256xf32>
    %c8_61 = arith.constant 8 : index
    %c0_62 = arith.constant 0 : index
    %c0_63 = arith.constant 0 : index
    %107 = vector.load %arg4[%c8_61, %c0_62, %c0_63] : memref<9x1x256xf32, #tpu.memory_space<vmem>>, vector<1x1x256xf32>
    %108 = vector.shape_cast %107 : vector<1x1x256xf32> to vector<1x256xf32>
    %109 = vector.broadcast %108 : vector<1x256xf32> to vector<8x256xf32>
    %110 = arith.mulf %106, %109 : vector<8x256xf32>
    %111 = tpu.concatenate %75, %80, %85, %90, %69, %95, %100, %105, %110 in 0 : vector<8x256xf32>, vector<8x256xf32>, vector<8x256xf32>, vector<8x256xf32>, vector<8x256xf32>, vector<8x256xf32>, vector<8x256xf32>, vector<8x256xf32>, vector<8x256xf32> -> vector<72x256xf32>
    %cst_64 = arith.constant dense<0.000000e+00> : vector<8x256xf32>
    %112 = tpu.matmul %70, %111, %cst_64 {dimension_numbers = #tpu.dot_dimension_numbers<[1], [0], [0], [1], [0, 0, 1, 1], [], []>} : vector<8x72xf32>, vector<72x256xf32>, vector<8x256xf32> -> vector<8x256xf32>
    %c0_65 = arith.constant 0 : index
    %c2_66 = arith.constant 2 : index
    %113 = vector.load %arg5[%c0_65, %c2_66] : memref<8x4xf32, #tpu.memory_space<vmem>>, vector<8x1xf32>
    %c0_67 = arith.constant 0 : index
    %c3_68 = arith.constant 3 : index
    %114 = vector.load %arg5[%c0_67, %c3_68] : memref<8x4xf32, #tpu.memory_space<vmem>>, vector<8x1xf32>
    %cst_69 = arith.constant dense<0.000000e+00> : vector<8xf32>
    %115 = vector.multi_reduction <add>, %112, %cst_69 [1] : vector<8x256xf32> to vector<8xf32>
    %116 = vector.shape_cast %115 : vector<8xf32> to vector<8x1xf32>
    %cst_70 = arith.constant 2.560000e+02 : f32
    %117 = vector.broadcast %cst_70 : f32 to vector<8x1xf32>
    %118 = arith.divf %116, %117 : vector<8x1xf32>
    %119 = vector.broadcast %118 : vector<8x1xf32> to vector<8x256xf32>
    %120 = arith.subf %112, %119 : vector<8x256xf32>
    %121 = arith.mulf %120, %120 : vector<8x256xf32>
    %cst_71 = arith.constant dense<0.000000e+00> : vector<8xf32>
    %122 = vector.multi_reduction <add>, %121, %cst_71 [1] : vector<8x256xf32> to vector<8xf32>
    %123 = vector.shape_cast %122 : vector<8xf32> to vector<8x1xf32>
    %cst_72 = arith.constant 2.560000e+02 : f32
    %124 = vector.broadcast %cst_72 : f32 to vector<8x1xf32>
    %125 = arith.divf %123, %124 : vector<8x1xf32>
    %126 = vector.broadcast %118 : vector<8x1xf32> to vector<8x256xf32>
    %127 = arith.subf %112, %126 : vector<8x256xf32>
    %cst_73 = arith.constant 9.99999974E-6 : f32
    %128 = vector.broadcast %cst_73 : f32 to vector<8x1xf32>
    %129 = arith.addf %125, %128 : vector<8x1xf32>
    %130 = math.rsqrt %129 : vector<8x1xf32>
    %131 = vector.broadcast %130 : vector<8x1xf32> to vector<8x256xf32>
    %132 = arith.mulf %127, %131 : vector<8x256xf32>
    %133 = vector.broadcast %113 : vector<8x1xf32> to vector<8x256xf32>
    %134 = arith.mulf %132, %133 : vector<8x256xf32>
    %135 = vector.broadcast %114 : vector<8x1xf32> to vector<8x256xf32>
    %136 = arith.addf %134, %135 : vector<8x256xf32>
    %137 = arith.addf %0, %136 : vector<8x256xf32>
    %c0_74 = arith.constant 0 : index
    %c0_75 = arith.constant 0 : index
    %138 = vector.load %arg6[%c0_74, %c0_75] : memref<8x256xf32, #tpu.memory_space<vmem>>, vector<8x256xf32>
    tpu.vector_store %arg6[%c0_74, %c0_75], %137 {strides = array<i32>} : memref<8x256xf32, #tpu.memory_space<vmem>>, vector<8x256xf32>,
    return
  }
  func.func @transform_0(%arg0: i32) -> (i32, i32) {
    %c0_i32 = arith.constant 0 : i32
    %c0_i32_0 = arith.constant 0 : i32
    %c0_i32_1 = arith.constant 0 : i32
    return %c0_i32, %c0_i32_0 : i32, i32
  }
  func.func @transform_1(%arg0: i32) -> (i32, i32) {
    %c0_i32 = arith.constant 0 : i32
    %c0_i32_0 = arith.constant 0 : i32
    %c0_i32_1 = arith.constant 0 : i32
    return %c0_i32, %c0_i32_0 : i32, i32
  }
  func.func @transform_2(%arg0: i32) -> (i32, i32) {
    %c0_i32 = arith.constant 0 : i32
    %c0_i32_0 = arith.constant 0 : i32
    %c0_i32_1 = arith.constant 0 : i32
    return %c0_i32, %c0_i32_0 : i32, i32
  }
  func.func @transform_3(%arg0: i32) -> (i32, i32, i32) {
    %c0_i32 = arith.constant 0 : i32
    %c0_i32_0 = arith.constant 0 : i32
    %c0_i32_1 = arith.constant 0 : i32
    %c0_i32_2 = arith.constant 0 : i32
    return %c0_i32, %c0_i32_0, %c0_i32_1 : i32, i32, i32
  }
  func.func @transform_4(%arg0: i32) -> (i32, i32) {
    %c0_i32 = arith.constant 0 : i32
    %c0_i32_0 = arith.constant 0 : i32
    %c0_i32_1 = arith.constant 0 : i32
    return %c0_i32, %c0_i32_0 : i32, i32
  }
  func.func @transform_5(%arg0: i32) -> (i32, i32) {
    %c0_i32 = arith.constant 0 : i32
    %c0_i32_0 = arith.constant 0 : i32
    %c0_i32_1 = arith.constant 0 : i32
    return %c0_i32, %c0_i32_0 : i32, i32
  }
}

</mosaic_0001>

<llo_original>
// kernel: tpu_custom_call.1
$region0: #{tpu_custom_call.1}
  #allocation0 [shape = 'u32[]', space=smem, size = 0x4, offset = 0x4, fixed_abs, tag = 'smem constant byte address 0x4 - core index']
  #allocation1 [shape = 'u32[144,128]{1,0:T(1,128)}', space=vmem, size = 0x12000, scoped, tag = 'internal scratch']
  %s0 = inlined_call_operand.hbm [shape: f32[8,256], index: 0, kind: input, shape index: {}]
  %s1 = inlined_call_operand.hbm [shape: f32[8,72], index: 1, kind: input, shape index: {}]
  %s2 = inlined_call_operand.hbm [shape: f32[8,72], index: 2, kind: input, shape index: {}]
  %s3 = inlined_call_operand.vmem [shape: f32[9,1,256], index: 3, kind: input, shape index: {}]
  %s4 = inlined_call_operand.vmem [shape: f32[8,4], index: 4, kind: input, shape index: {}]
  %s5 = inlined_call_operand.hbm [shape: f32[8,256], index: 5, kind: output, shape index: {}]
  %s6 = sld [smem:[#allocation0]]
  $region42: #{tpu_custom_call.1} parent=0
    _
  %s8 = ssub.s32 1, %s6
  %s9 = scalar_select 0, %s8, %s6
  $region1: #{tpu_custom_call.1} parent=0
    #allocation2 [shape = 'u8[8192]{0}', space=vmem, size = 0x2000, scoped, tag = 'input window, operand 0, single buffered']
    #allocation3 [shape = 's32[1]{0}', space=sflag, size = 0x4, scoped, tag = 'scoped memory for tpu_custom_call.1']
    #allocation4 [shape = 's32[1]{0}', space=sflag, size = 0x4, scoped, tag = 'scoped memory for tpu_custom_call.1']
    #allocation5 [shape = 'u8[4096]{0}', space=vmem, size = 0x1000, scoped, tag = 'input window, operand 1, single buffered']
    #allocation6 [shape = 's32[1]{0}', space=sflag, size = 0x4, scoped, tag = 'scoped memory for tpu_custom_call.1']
    #allocation7 [shape = 'u8[4096]{0}', space=vmem, size = 0x1000, scoped, tag = 'input window, operand 2, single buffered']
    #allocation8 [shape = 'u8[8192]{0}', space=vmem, size = 0x2000, scoped, tag = 'output window, operand 0, single buffered']
    %10 = vsyncpa [#allocation3], 0
    %11 = vsyncpa [#allocation6], 0
    %12 = vsyncpa [#allocation4], 0
    // Predicated region
    $region2: #{tpu_custom_call.1} parent=1 // pred_check
      _
    $region3: #{tpu_custom_call.1} parent=1 // pred_check_branch
      %14 = sbr.rel (0) target = $region5
    $region4: #{tpu_custom_call.1} parent=1 // pred_region
      %s16 = ssub.s32 256, 256
      %17 = vsyncadd [#allocation3], %s16
      %s19 = sshll.u32 [#allocation2], 4
      %s20 = int_to_ptr.vmem [resolvable:$true] %s19
      %22 = dma.hbm_to_vmem [thread:$0]  %s0, 256, %s20, [#allocation3]
    $region5: #{tpu_custom_call.1} parent=1 // pred_fallthru
      _
    // Predicated region
    $region6: #{tpu_custom_call.1} parent=1 // pred_check
      _
    $region7: #{tpu_custom_call.1} parent=1 // pred_check_branch
      %24 = sbr.rel (0) target = $region9
    $region8: #{tpu_custom_call.1} parent=1 // pred_region
      %s26 = ssub.s32 128, 128
      %27 = vsyncadd [#allocation6], %s26
      %s29 = sshll.u32 [#allocation5], 4
      %s30 = int_to_ptr.vmem [resolvable:$true] %s29
      %32 = dma.hbm_to_vmem [thread:$0]  %s1, 128, %s30, [#allocation6]
    $region9: #{tpu_custom_call.1} parent=1 // pred_fallthru
      _
    // Predicated region
    $region10: #{tpu_custom_call.1} parent=1 // pred_check
      _
    $region11: #{tpu_custom_call.1} parent=1 // pred_check_branch
      %34 = sbr.rel (0) target = $region13
    $region12: #{tpu_custom_call.1} parent=1 // pred_region
      %s36 = ssub.s32 128, 128
      %37 = vsyncadd [#allocation6], %s36
      %s39 = sshll.u32 [#allocation7], 4
      %s40 = int_to_ptr.vmem [resolvable:$true] %s39
      %42 = dma.hbm_to_vmem [thread:$0]  %s2, 128, %s40, [#allocation6]
    $region13: #{tpu_custom_call.1} parent=1 // pred_fallthru
      _
    // Predicated region
    $region14: #{tpu_custom_call.1} parent=1 // pred_check
      _
    $region15: #{tpu_custom_call.1} parent=1 // pred_check_branch
      %44 = sbr.rel (0) target = $region17
    $region16: #{tpu_custom_call.1} parent=1 // pred_region
      _
    $region17: #{tpu_custom_call.1} parent=1 // pred_fallthru
      _
    // Predicated region
    $region18: #{tpu_custom_call.1} parent=1 // pred_check
      _
    $region19: #{tpu_custom_call.1} parent=1 // pred_check_branch
      %46 = sbr.rel (0) target = $region21
    $region20: #{tpu_custom_call.1} parent=1 // pred_region
      _
    $region21: #{tpu_custom_call.1} parent=1 // pred_fallthru
      _
    // Predicated region
    $region22: #{tpu_custom_call.1} parent=1 // pred_check
      _
    $region23: #{tpu_custom_call.1} parent=1 // pred_check_branch
      %48 = sbr.rel (0) target = $region25
    $region24: #{tpu_custom_call.1} parent=1 // pred_region
      %49 = dma.done [#allocation3], 256
    $region25: #{tpu_custom_call.1} parent=1 // pred_fallthru
      _
    // Predicated region
    $region26: #{tpu_custom_call.1} parent=1 // pred_check
      _
    $region27: #{tpu_custom_call.1} parent=1 // pred_check_branch
      %51 = sbr.rel (0) target = $region29
    $region28: #{tpu_custom_call.1} parent=1 // pred_region
      %52 = dma.done [#allocation6], 128
    $region29: #{tpu_custom_call.1} parent=1 // pred_fallthru
      _
    // Predicated region
    $region30: #{tpu_custom_call.1} parent=1 // pred_check
      _
    $region31: #{tpu_custom_call.1} parent=1 // pred_check_branch
      %54 = sbr.rel (0) target = $region33
    $region32: #{tpu_custom_call.1} parent=1 // pred_region
      %55 = dma.done [#allocation6], 128
    $region33: #{tpu_custom_call.1} parent=1 // pred_fallthru
      _
    %v56 = vld [vmem:[#allocation2] sm:$0xff]
    %v57 = vld [vmem:[#allocation2 + $0x8] sm:$0xff]
    %v58 = vld [vmem:[#allocation5] sm:$0xff]
    %59 = vrot.lane.b32.xlu0 %v56, 17
    %v60 = vpop.permute.xlu0 %59
    %61 = vrot.lane.b32.xlu0 %v57, 17
    %v62 = vpop.permute.xlu0 %61
    %v63 = vlaneseq
    %v64 = vand.u32 %v63, 127
    %vm65 = vcmp.lt.s32.totalorder %v64, 17
    %v66 = vsel %vm65, %v60, %v62
    %v67 = vsel %vm65, %v62, %v60
    %v68 = vld [vmem:[%s3] sm:$0x3]
    %v70 = vlaneseq
    %v71 = vshrl.u32 %v70, 7
    %v72 = vsub.s32 0, %v71
    %v73 = vrot.slane %v68, %v72
    %v74 = vlaneseq
    %v75 = vshrl.u32 %v74, 7
    %v76 = vsub.s32 1, %v75
    %v77 = vrot.slane %v68, %v76
    %v80 = vmul.f32 %v67, %v73
    %v81 = vmul.f32 %v66, %v77
    %82 = vrot.lane.b32.xlu0 %v56, 16
    %v83 = vpop.permute.xlu0 %82
    %84 = vrot.lane.b32.xlu0 %v57, 16
    %v85 = vpop.permute.xlu0 %84
    %vm86 = vcmp.lt.s32.totalorder %v64, 16
    %v87 = vsel %vm86, %v83, %v85
    %v88 = vsel %vm86, %v85, %v83
    %s89 = scalar_lea.vmem %s3, 2
    %v90 = vld [vmem:[%s89] sm:$0x3]
    %v92 = vlaneseq
    %v93 = vshrl.u32 %v92, 7
    %v94 = vsub.s32 0, %v93
    %v95 = vrot.slane %v90, %v94
    %v96 = vlaneseq
    %v97 = vshrl.u32 %v96, 7
    %v98 = vsub.s32 1, %v97
    %v99 = vrot.slane %v90, %v98
    %v102 = vmul.f32 %v88, %v95
    %v103 = vmul.f32 %v87, %v99
    %104 = vrot.lane.b32.xlu0 %v56, 15
    %v105 = vpop.permute.xlu0 %104
    %106 = vrot.lane.b32.xlu0 %v57, 15
    %v107 = vpop.permute.xlu0 %106
    %vm108 = vcmp.lt.s32.totalorder %v64, 15
    %v109 = vsel %vm108, %v105, %v107
    %v110 = vsel %vm108, %v107, %v105
    %s111 = scalar_lea.vmem %s3, 4
    %v112 = vld [vmem:[%s111] sm:$0x3]
    %v114 = vlaneseq
    %v115 = vshrl.u32 %v114, 7
    %v116 = vsub.s32 0, %v115
    %v117 = vrot.slane %v112, %v116
    %v118 = vlaneseq
    %v119 = vshrl.u32 %v118, 7
    %v120 = vsub.s32 1, %v119
    %v121 = vrot.slane %v112, %v120
    %v124 = vmul.f32 %v110, %v117
    %v125 = vmul.f32 %v109, %v121
    %126 = vrot.lane.b32.xlu0 %v56, 1
    %v127 = vpop.permute.xlu0 %126
    %128 = vrot.lane.b32.xlu0 %v57, 1
    %v129 = vpop.permute.xlu0 %128
    %vm130 = vcmp.lt.s32.totalorder %v64, 1
    %v131 = vsel %vm130, %v127, %v129
    %v132 = vsel %vm130, %v129, %v127
    %s133 = scalar_lea.vmem %s3, 6
    %v134 = vld [vmem:[%s133] sm:$0x3]
    %v136 = vlaneseq
    %v137 = vshrl.u32 %v136, 7
    %v138 = vsub.s32 0, %v137
    %v139 = vrot.slane %v134, %v138
    %v140 = vlaneseq
    %v141 = vshrl.u32 %v140, 7
    %v142 = vsub.s32 1, %v141
    %v143 = vrot.slane %v134, %v142
    %v146 = vmul.f32 %v132, %v139
    %v147 = vmul.f32 %v131, %v143
    %148 = vrot.lane.b32.xlu0 %v56, 127
    %v149 = vpop.permute.xlu0 %148
    %150 = vrot.lane.b32.xlu0 %v57, 127
    %v151 = vpop.permute.xlu0 %150
    %vm152 = vcmp.lt.s32.totalorder %v64, 127
    %v153 = vsel %vm152, %v149, %v151
    %v154 = vsel %vm152, %v151, %v149
    %s155 = scalar_lea.vmem %s3, 10
    %v156 = vld [vmem:[%s155] sm:$0x3]
    %v158 = vlaneseq
    %v159 = vshrl.u32 %v158, 7
    %v160 = vsub.s32 0, %v159
    %v161 = vrot.slane %v156, %v160
    %v162 = vlaneseq
    %v163 = vshrl.u32 %v162, 7
    %v164 = vsub.s32 1, %v163
    %v165 = vrot.slane %v156, %v164
    %v168 = vmul.f32 %v153, %v161
    %v169 = vmul.f32 %v154, %v165
    %170 = vrot.lane.b32.xlu0 %v56, 113
    %v171 = vpop.permute.xlu0 %170
    %172 = vrot.lane.b32.xlu0 %v57, 113
    %v173 = vpop.permute.xlu0 %172
    %vm174 = vcmp.lt.s32.totalorder %v64, 113
    %v175 = vsel %vm174, %v171, %v173
    %v176 = vsel %vm174, %v173, %v171
    %s177 = scalar_lea.vmem %s3, 12
    %v178 = vld [vmem:[%s177] sm:$0x3]
    %v180 = vlaneseq
    %v181 = vshrl.u32 %v180, 7
    %v182 = vsub.s32 0, %v181
    %v183 = vrot.slane %v178, %v182
    %v184 = vlaneseq
    %v185 = vshrl.u32 %v184, 7
    %v186 = vsub.s32 1, %v185
    %v187 = vrot.slane %v178, %v186
    %v190 = vmul.f32 %v175, %v183
    %v191 = vmul.f32 %v176, %v187
    %192 = vrot.lane.b32.xlu0 %v56, 112
    %v193 = vpop.permute.xlu0 %192
    %194 = vrot.lane.b32.xlu0 %v57, 112
    %v195 = vpop.permute.xlu0 %194
    %vm196 = vcmp.lt.s32.totalorder %v64, 112
    %v197 = vsel %vm196, %v193, %v195
    %v198 = vsel %vm196, %v195, %v193
    %s199 = scalar_lea.vmem %s3, 14
    %v200 = vld [vmem:[%s199] sm:$0x3]
    %v202 = vlaneseq
    %v203 = vshrl.u32 %v202, 7
    %v204 = vsub.s32 0, %v203
    %v205 = vrot.slane %v200, %v204
    %v206 = vlaneseq
    %v207 = vshrl.u32 %v206, 7
    %v208 = vsub.s32 1, %v207
    %v209 = vrot.slane %v200, %v208
    %v212 = vmul.f32 %v197, %v205
    %v213 = vmul.f32 %v198, %v209
    %214 = vrot.lane.b32.xlu0 %v56, 111
    %v215 = vpop.permute.xlu0 %214
    %216 = vrot.lane.b32.xlu0 %v57, 111
    %v217 = vpop.permute.xlu0 %216
    %vm218 = vcmp.lt.s32.totalorder %v64, 111
    %v219 = vsel %vm218, %v215, %v217
    %v220 = vsel %vm218, %v217, %v215
    %s221 = scalar_lea.vmem %s3, 16
    %v222 = vld [vmem:[%s221] sm:$0x3]
    %v224 = vlaneseq
    %v225 = vshrl.u32 %v224, 7
    %v226 = vsub.s32 0, %v225
    %v227 = vrot.slane %v222, %v226
    %v228 = vlaneseq
    %v229 = vshrl.u32 %v228, 7
    %v230 = vsub.s32 1, %v229
    %v231 = vrot.slane %v222, %v230
    %v234 = vmul.f32 %v219, %v227
    %v235 = vmul.f32 %v220, %v231
    %vm236 = vcmask 588800
    %v238 = vsel %vm236, %v58, 0
    %240 = vmatprep.subr.mxu0 %v81
    %241 = vmatpush1.msra.mxu0 %v80
    %242 = vmatprep.subr.mxu0 %v103
    %243 = vmatpush1.msra.mxu0 %v102
    %244 = vmatprep.subr.mxu0 %v125
    %245 = vmatpush1.msra.mxu0 %v124
    %246 = vmatprep.subr.mxu0 %v147
    %247 = vmatpush1.msra.mxu0 %v146
    %248 = vmatprep.subr.mxu0 %v57
    %249 = vmatpush1.msra.mxu0 %v56
    %250 = vmatprep.subr.mxu0 %v169
    %251 = vmatpush1.msra.mxu0 %v168
    %252 = vmatprep.subr.mxu0 %v191
    %253 = vmatpush1.msra.mxu0 %v190
    %254 = vmatprep.subr.mxu0 %v213
    %255 = vmatpush1.msra.mxu0 %v212
    %256 = vmatprep.subr.mxu0 %v235
    %257 = vmatpush1.msra.mxu0 %v234
    %258 = vmatprep.subr.mxu0 0.0
    %259 = vmatpush1.msra.mxu0 0.0
    %260 = vmatprep.subr.mxu0 0.0
    %261 = vmatpush1.msra.mxu0 0.0
    %262 = vmatprep.subr.mxu0 0.0
    %263 = vmatpush1.msra.mxu0 0.0
    %264 = vmatprep.subr.mxu0 0.0
    %265 = vmatpush1.msra.mxu0 0.0
    %266 = vmatprep.subr.mxu0 0.0
    %267 = vmatpush1.msra.mxu0 0.0
    %268 = vmatprep.subr.mxu0 0.0
    %269 = vmatpush1.msra.mxu0 0.0
    %270 = vmatprep.subr.mxu0 0.0
    %271 = vmatpush1.msra.mxu0 0.0
    %272 = vmatprep.subr.mxu0 0.0
    %273 = vmatpush1.msra.mxu0 0.0
    %274 = vmatprep.subr.mxu0 0.0
    %275 = vmatpush1.msra.mxu0 0.0
    %276 = vmatprep.subr.mxu0 0.0
    %277 = vmatpush1.msra.mxu0 0.0
    %278 = vmatprep.subr.mxu0 0.0
    %279 = vmatpush1.msra.mxu0 0.0
    %280 = vmatprep.subr.mxu0 0.0
    %281 = vmatpush1.msra.mxu0 0.0
    %282 = vmatprep.subr.mxu0 0.0
    %283 = vmatpush1.msra.mxu0 0.0
    %284 = vmatprep.subr.mxu0 0.0
    %285 = vmatpush1.msra.mxu0 0.0
    %286 = vmatprep.subr.mxu0 0.0
    %287 = vmatpush1.msra.mxu0 0.0
    %288 = vmatprep.subr.mxu0 0.0
    %289 = vmatpush1.msra.mxu0 0.0
    %290 = vmatprep.subr.mxu0 0.0
    %291 = vmatpush1.msra.mxu0 0.0
    %292 = vmatprep.subr.mxu0 0.0
    %293 = vmatpush1.msra.mxu0 0.0
    %294 = vmatprep.subr.mxu0 0.0
    %295 = vmatpush1.msra.mxu0 0.0
    %296 = vmatprep.subr.mxu0 0.0
    %297 = vmatpush1.msra.mxu0 0.0
    %298 = vmatprep.subr.mxu0 0.0
    %299 = vmatpush1.msra.mxu0 0.0
    %300 = vmatprep.subr.mxu0 0.0
    %301 = vmatpush1.msra.mxu0 0.0
    %302 = vmatprep.subr.mxu0 0.0
    %303 = vmatpush1.msra.mxu0 0.0
    %304 = vmatprep.mubr.f32.mxu0 0.0
    %305 = vmatmul.mubr.f32.gmra.mrb[0].mxu0 %v238
    %v306 = vpop.f32.mrb[0].mxu0
    %v307 = vadd.f32 0.0, %v306
    %v308 = vpop.f32.mrb[0].mxu0
    %v309 = vadd.f32 0.0, %v308
    %310 = vdwg.mxu0
    %v311 = vld [vmem:[%s4] sm:$0xff]
    %v312 = vadd.f32 %v307, %v309
    %313 = vadd.xlane.f32.xlu0 %v312
    %v314 = vpop.xlane.xlu0 %313
    %v315 = vrcp.pop 256.0
    %v316 = vmul.f32 %v314, %v315
    %v317 = vsub.f32 %v307, %v316
    %v318 = vsub.f32 %v309, %v316
    %v319 = vmul.f32 %v317, %v317
    %v320 = vmul.f32 %v318, %v318
    %v321 = vadd.f32 %v319, %v320
    %322 = vadd.xlane.f32.xlu0 %v321
    %v323 = vpop.xlane.xlu0 %322
    %v324 = vmul.f32 %v323, %v315
    %v325 = vadd.f32 %v324, 1e-05
    %v326 = vrsqrt.pop %v325
    %v327 = vmul.f32 %v317, %v326
    %v328 = vmul.f32 %v318, %v326
    %330 = vset.pattern.permute.xlu0 0
    %331 = vperm.xlu0 %330, %v311
    %v332 = vpop.permute.xlu0 %331
    %v334 = vmul.f32 %v327, %v332
    %v335 = vmul.f32 %v328, %v332
    %336 = vset.pattern.permute.xlu0 1
    %337 = vperm.xlu0 %336, %v311
    %v338 = vpop.permute.xlu0 %337
    %v340 = vadd.f32 %v334, %v338
    %v341 = vadd.f32 %v335, %v338
    %v342 = vmax.f32 %v340, 0.0
    %v343 = vmax.f32 %v341, 0.0
    %v344 = vld [vmem:[#allocation7] sm:$0xff]
    %345 = vrot.lane.b32.xlu0 %v342, 17
    %v346 = vpop.permute.xlu0 %345
    %347 = vrot.lane.b32.xlu0 %v343, 17
    %v348 = vpop.permute.xlu0 %347
    %v349 = vsel %vm65, %v346, %v348
    %v350 = vsel %vm65, %v348, %v346
    %v351 = vmul.f32 %v350, %v73
    %v352 = vmul.f32 %v349, %v77
    %353 = vrot.lane.b32.xlu0 %v342, 16
    %v354 = vpop.permute.xlu0 %353
    %355 = vrot.lane.b32.xlu0 %v343, 16
    %v356 = vpop.permute.xlu0 %355
    %v357 = vsel %vm86, %v354, %v356
    %v358 = vsel %vm86, %v356, %v354
    %v359 = vmul.f32 %v358, %v95
    %v360 = vmul.f32 %v357, %v99
    %361 = vrot.lane.b32.xlu0 %v342, 15
    %v362 = vpop.permute.xlu0 %361
    %363 = vrot.lane.b32.xlu0 %v343, 15
    %v364 = vpop.permute.xlu0 %363
    %v365 = vsel %vm108, %v362, %v364
    %v366 = vsel %vm108, %v364, %v362
    %v367 = vmul.f32 %v366, %v117
    %v368 = vmul.f32 %v365, %v121
    %369 = vrot.lane.b32.xlu0 %v342, 1
    %v370 = vpop.permute.xlu0 %369
    %371 = vrot.lane.b32.xlu0 %v343, 1
    %v372 = vpop.permute.xlu0 %371
    %v373 = vsel %vm130, %v370, %v372
    %v374 = vsel %vm130, %v372, %v370
    %v375 = vmul.f32 %v374, %v139
    %v376 = vmul.f32 %v373, %v143
    %377 = vrot.lane.b32.xlu0 %v342, 127
    %v378 = vpop.permute.xlu0 %377
    %379 = vrot.lane.b32.xlu0 %v343, 127
    %v380 = vpop.permute.xlu0 %379
    %v381 = vsel %vm152, %v378, %v380
    %v382 = vsel %vm152, %v380, %v378
    %v383 = vmul.f32 %v381, %v161
    %v384 = vmul.f32 %v382, %v165
    %385 = vrot.lane.b32.xlu0 %v342, 113
    %v386 = vpop.permute.xlu0 %385
    %387 = vrot.lane.b32.xlu0 %v343, 113
    %v388 = vpop.permute.xlu0 %387
    %v389 = vsel %vm174, %v386, %v388
    %v390 = vsel %vm174, %v388, %v386
    %v391 = vmul.f32 %v389, %v183
    %v392 = vmul.f32 %v390, %v187
    %393 = vrot.lane.b32.xlu0 %v342, 112
    %v394 = vpop.permute.xlu0 %393
    %395 = vrot.lane.b32.xlu0 %v343, 112
    %v396 = vpop.permute.xlu0 %395
    %v397 = vsel %vm196, %v394, %v396
    %v398 = vsel %vm196, %v396, %v394
    %v399 = vmul.f32 %v397, %v205
    %v400 = vmul.f32 %v398, %v209
    %401 = vrot.lane.b32.xlu0 %v342, 111
    %v402 = vpop.permute.xlu0 %401
    %403 = vrot.lane.b32.xlu0 %v343, 111
    %v404 = vpop.permute.xlu0 %403
    %v405 = vsel %vm218, %v402, %v404
    %v406 = vsel %vm218, %v404, %v402
    %v407 = vmul.f32 %v405, %v227
    %v408 = vmul.f32 %v406, %v231
    %v410 = vsel %vm236, %v344, 0
    %412 = vmatprep.subr.mxu0 %v352
    %413 = vmatpush1.msra.mxu0 %v351
    %414 = vmatprep.subr.mxu0 %v360
    %415 = vmatpush1.msra.mxu0 %v359
    %416 = vmatprep.subr.mxu0 %v368
    %417 = vmatpush1.msra.mxu0 %v367
    %418 = vmatprep.subr.mxu0 %v376
    %419 = vmatpush1.msra.mxu0 %v375
    %420 = vmatprep.subr.mxu0 %v343
    %421 = vmatpush1.msra.mxu0 %v342
    %422 = vmatprep.subr.mxu0 %v384
    %423 = vmatpush1.msra.mxu0 %v383
    %424 = vmatprep.subr.mxu0 %v392
    %425 = vmatpush1.msra.mxu0 %v391
    %426 = vmatprep.subr.mxu0 %v400
    %427 = vmatpush1.msra.mxu0 %v399
    %428 = vmatprep.subr.mxu0 %v408
    %429 = vmatpush1.msra.mxu0 %v407
    %430 = vmatprep.subr.mxu0 0.0
    %431 = vmatpush1.msra.mxu0 0.0
    %432 = vmatprep.subr.mxu0 0.0
    %433 = vmatpush1.msra.mxu0 0.0
    %434 = vmatprep.subr.mxu0 0.0
    %435 = vmatpush1.msra.mxu0 0.0
    %436 = vmatprep.subr.mxu0 0.0
    %437 = vmatpush1.msra.mxu0 0.0
    %438 = vmatprep.subr.mxu0 0.0
    %439 = vmatpush1.msra.mxu0 0.0
    %440 = vmatprep.subr.mxu0 0.0
    %441 = vmatpush1.msra.mxu0 0.0
    %442 = vmatprep.subr.mxu0 0.0
    %443 = vmatpush1.msra.mxu0 0.0
    %444 = vmatprep.subr.mxu0 0.0
    %445 = vmatpush1.msra.mxu0 0.0
    %446 = vmatprep.subr.mxu0 0.0
    %447 = vmatpush1.msra.mxu0 0.0
    %448 = vmatprep.subr.mxu0 0.0
    %449 = vmatpush1.msra.mxu0 0.0
    %450 = vmatprep.subr.mxu0 0.0
    %451 = vmatpush1.msra.mxu0 0.0
    %452 = vmatprep.subr.mxu0 0.0
    %453 = vmatpush1.msra.mxu0 0.0
    %454 = vmatprep.subr.mxu0 0.0
    %455 = vmatpush1.msra.mxu0 0.0
    %456 = vmatprep.subr.mxu0 0.0
    %457 = vmatpush1.msra.mxu0 0.0
    %458 = vmatprep.subr.mxu0 0.0
    %459 = vmatpush1.msra.mxu0 0.0
    %460 = vmatprep.subr.mxu0 0.0
    %461 = vmatpush1.msra.mxu0 0.0
    %462 = vmatprep.subr.mxu0 0.0
    %463 = vmatpush1.msra.mxu0 0.0
    %464 = vmatprep.subr.mxu0 0.0
    %465 = vmatpush1.msra.mxu0 0.0
    %466 = vmatprep.subr.mxu0 0.0
    %467 = vmatpush1.msra.mxu0 0.0
    %468 = vmatprep.subr.mxu0 0.0
    %469 = vmatpush1.msra.mxu0 0.0
    %470 = vmatprep.subr.mxu0 0.0
    %471 = vmatpush1.msra.mxu0 0.0
    %472 = vmatprep.subr.mxu0 0.0
    %473 = vmatpush1.msra.mxu0 0.0
    %474 = vmatprep.subr.mxu0 0.0
    %475 = vmatpush1.msra.mxu0 0.0
    %476 = vmatprep.mubr.f32.mxu0 0.0
    %477 = vmatmul.mubr.f32.gmra.mrb[0].mxu0 %v410
    %v478 = vpop.f32.mrb[0].mxu0
    %v479 = vadd.f32 0.0, %v478
    %v480 = vpop.f32.mrb[0].mxu0
    %v481 = vadd.f32 0.0, %v480
    %482 = vdwg.mxu0
    %v483 = vadd.f32 %v479, %v481
    %484 = vadd.xlane.f32.xlu0 %v483
    %v485 = vpop.xlane.xlu0 %484
    %v486 = vmul.f32 %v485, %v315
    %v487 = vsub.f32 %v479, %v486
    %v488 = vsub.f32 %v481, %v486
    %v489 = vmul.f32 %v487, %v487
    %v490 = vmul.f32 %v488, %v488
    %v491 = vadd.f32 %v489, %v490
    %492 = vadd.xlane.f32.xlu0 %v491
    %v493 = vpop.xlane.xlu0 %492
    %v494 = vmul.f32 %v493, %v315
    %v495 = vadd.f32 %v494, 1e-05
    %v496 = vrsqrt.pop %v495
    %v497 = vmul.f32 %v487, %v496
    %v498 = vmul.f32 %v488, %v496
    %499 = vset.pattern.permute.xlu0 2
    %500 = vperm.xlu0 %499, %v311
    %v501 = vpop.permute.xlu0 %500
    %v503 = vmul.f32 %v497, %v501
    %v504 = vmul.f32 %v498, %v501
    %505 = vset.pattern.permute.xlu0 3
    %506 = vperm.xlu0 %505, %v311
    %v507 = vpop.permute.xlu0 %506
    %v509 = vadd.f32 %v503, %v507
    %v510 = vadd.f32 %v504, %v507
    %v511 = vadd.f32 %v56, %v509
    %v512 = vadd.f32 %v57, %v510
    %513 = vst [vmem:[#allocation8] sm:$0xff] %v511
    %514 = vst [vmem:[#allocation8 + $0x8] sm:$0xff] %v512
    // Predicated region
    $region34: #{tpu_custom_call.1} parent=1 // pred_check
      _
    $region35: #{tpu_custom_call.1} parent=1 // pred_check_branch
      %516 = sbr.rel (0) target = $region37
    $region36: #{tpu_custom_call.1} parent=1 // pred_region
      %s518 = ssub.s32 256, 256
      %519 = vsyncadd [#allocation4], %s518
      %s521 = sshll.u32 [#allocation8], 4
      %s522 = int_to_ptr.vmem [resolvable:$true] %s521
      %524 = dma.vmem_to_hbm [thread:$0]  %s522, 256, %s5, [#allocation4]
    $region37: #{tpu_custom_call.1} parent=1 // pred_fallthru
      _
    // Predicated region
    $region38: #{tpu_custom_call.1} parent=1 // pred_check
      _
    $region39: #{tpu_custom_call.1} parent=1 // pred_check_branch
      %526 = sbr.rel (0) target = $region41
    $region40: #{tpu_custom_call.1} parent=1 // pred_region
      %527 = dma.done [#allocation4], 256
    $region41: #{tpu_custom_call.1} parent=1 // pred_fallthru
      _
    %528 = vsyncpa [#allocation3], 1
    %529 = vsyncpa [#allocation6], 1
    %530 = vsyncpa [#allocation4], 1

</llo_original>
